<compile_context>
chip_gen: v6e
topology: v6e:2x2x1
jax: 0.10.0
libtpu: 0.0.40
codegen_flags: <defaults>
</compile_context>

<pallas_src>
import jax
import jax.numpy as jnp
from jax.experimental import pallas as pl
from jax.experimental.pallas import tpu as pltpu


def _sdpa_dropout_kernel(scale_ref, p_ref, invk_ref, x1_ref, x2_ref, u_ref, o_ref):
    # Blocks: x1/x2/o = (Bt, S, Dp); u = (Bt, S, S).  Scalars live in SMEM.
    x1 = x1_ref[...].astype(jnp.bfloat16)
    x2 = x2_ref[...].astype(jnp.bfloat16)

    # qk = x1 @ x2^T over the feature dim — batched contraction on the last dims,
    # so the MXU consumes x2 directly (no XLU transpose / relayout).
    qk = jnp.einsum('bqd,bkd->bqk', x1, x2, preferred_element_type=jnp.float32)
    scaled = qk * scale_ref[0]

    # Numerically-stable softmax numerator; the normalization is deferred and fused
    # with the dropout rescale after the second matmul.
    m = jnp.max(scaled, axis=-1, keepdims=True)
    e = jnp.exp(scaled - m)
    denom = jnp.sum(e, axis=-1, keepdims=True)                    # (Bt, S, 1)

    # Inverted dropout: keep with prob (1-p).  One compare + one select per element.
    keep = u_ref[...] >= p_ref[0]
    e_keep = jnp.where(keep, e, 0.0).astype(jnp.bfloat16)         # (Bt, S, S)

    # Second matmul on unnormalized, masked probabilities (bf16 MXU, f32 accum).
    out = jnp.einsum('bqk,bkd->bqd', e_keep, x2, preferred_element_type=jnp.float32)

    # Fused softmax normalization + 1/(1-p) dropout rescale: per-row scale, O(S*D).
    row_scale = invk_ref[0] / denom                                # (Bt, S, 1)
    o_ref[...] = (out * row_scale).astype(o_ref.dtype)


def sdpa_dropout(x1, x2, scale_factor, dropout_p, key=None, batch_tile=8):
    """x1, x2: (B, S, D) float32; scale_factor: single-element broadcastable tensor.

    Returns (B, S, D) float32 matching the PyTorch module's forward (training-mode
    dropout), modulo the dropout RNG stream and bf16 MXU operands.
    """
    B, S, D = x1.shape
    assert x2.shape == (B, S, D), "x1 and x2 must have identical (B, S, D) shapes"

    scale = jnp.asarray(scale_factor, dtype=jnp.float32)
    assert scale.size == 1, "scale_factor must contain exactly one element"
    scale = scale.reshape(1)

    p = jnp.asarray(dropout_p, dtype=jnp.float32).reshape(1)
    # Guard p == 1.0: PyTorch returns zeros; avoid inf scaling.
    inv_keep = jnp.where(p < 1.0, 1.0 / (1.0 - p), 0.0).astype(jnp.float32)

    if key is None:
        key = jax.random.PRNGKey(0)
    # TODO(synk): dropout mask generated host-side-of-kernel (jax.random), not torch RNG.
    u = jax.random.uniform(key, (B, S, S), dtype=jnp.float32)

    # Lane-dense minor dim: pad D up to a multiple of 128 (zeros do not change qk,
    # and the padded output columns are exactly zero — sliced off below).
    Dp = ((D + 127) // 128) * 128
    if Dp != D:
        pad = ((0, 0), (0, 0), (0, Dp - D))
        x1p = jnp.pad(x1, pad)
        x2p = jnp.pad(x2, pad)
    else:
        x1p, x2p = x1, x2

    Bt = max(1, min(B, batch_tile))
    grid = (pl.cdiv(B, Bt),)

    out = pl.pallas_call(
        _sdpa_dropout_kernel,
        out_shape=jax.ShapeDtypeStruct((B, S, Dp), jnp.float32),
        grid=grid,
        in_specs=[
            pl.BlockSpec(memory_space=pltpu.MemorySpace.SMEM),   # scale (1,)
            pl.BlockSpec(memory_space=pltpu.MemorySpace.SMEM),   # dropout p (1,)
            pl.BlockSpec(memory_space=pltpu.MemorySpace.SMEM),   # 1/(1-p) (1,)
            pl.BlockSpec((Bt, S, Dp), lambda b: (b, 0, 0)),      # x1
            pl.BlockSpec((Bt, S, Dp), lambda b: (b, 0, 0)),      # x2
            pl.BlockSpec((Bt, S, S), lambda b: (b, 0, 0)),       # uniform noise
        ],
        out_specs=pl.BlockSpec((Bt, S, Dp), lambda b: (b, 0, 0)),
        compiler_params=pltpu.CompilerParams(
            dimension_semantics=("parallel",)),
    )(scale, p, inv_keep, x1p, x2p, u)

    return out[..., :D] if Dp != D else out


def _reference(x1, x2, scale_factor, dropout_p, u):
    """Pure-JAX f32 reference with the same keep mask (PyTorch formulation)."""
    qk = jnp.einsum('bqd,bkd->bqk', x1, x2)
    sm = jax.nn.softmax(qk * jnp.asarray(scale_factor, jnp.float32).reshape(()), axis=-1)
    keep = (u >= jnp.float32(dropout_p)).astype(jnp.float32)
    dropped = sm * keep * (1.0 / (1.0 - dropout_p))
    return jnp.einsum('bqk,bkd->bqd', dropped, x2)


if __name__ == "__main__":
    key = jax.random.PRNGKey(0)
    k1, k2, k3, k4 = jax.random.split(key, 4)
    # Shapes match the PyTorch module: x1, x2 = (1, 10, 20), scale_factor = (1, 1, 1)
    x1 = jax.random.normal(k1, (1, 10, 20), dtype=jnp.float32)
    x2 = jax.random.normal(k2, (1, 10, 20), dtype=jnp.float32)
    scale_factor = jax.random.normal(k3, (1, 1, 1), dtype=jnp.float32)
    dropout_p = 0.1

    out = sdpa_dropout(x1, x2, scale_factor, dropout_p, key=k4)
    jax.block_until_ready(out)

    assert out.shape == (1, 10, 20) and out.dtype == jnp.float32
    assert bool(jnp.all(jnp.isfinite(out)))

    # Sanity check vs an f32 JAX reference using the same dropout mask.
    # Loose tolerance: the kernel uses bf16 MXU operands (f32 accumulation).
    u = jax.random.uniform(k4, (1, 10, 10), dtype=jnp.float32)
    ref = _reference(x1, x2, scale_factor, dropout_p, u)
    assert bool(jnp.allclose(out, ref, atol=2e-1, rtol=2e-1))

    print("KERNEL_OK")
</pallas_src>

<mosaic_0001>
module attributes {stable_mosaic.version = 11 : i64} {
  func.func @_sdpa_dropout_kernel(%arg0: i32, %arg1: memref<1xf32, #tpu.memory_space<smem>>, %arg2: memref<1xf32, #tpu.memory_space<smem>>, %arg3: memref<1xf32, #tpu.memory_space<smem>>, %arg4: memref<1x10x128xf32, #tpu.memory_space<vmem>>, %arg5: memref<1x10x128xf32, #tpu.memory_space<vmem>>, %arg6: memref<1x10x10xf32, #tpu.memory_space<vmem>>, %arg7: memref<1x10x128xf32, #tpu.memory_space<vmem>>) attributes {dimension_semantics = [#tpu.dimension_semantics<parallel>], iteration_bounds = array<i64: 1>, scalar_prefetch = 0 : i64, scratch_operands = 0 : i64, tpu.core_type = #tpu.core_type<tc>, window_params = [{transform_indices = @transform_0, window_bounds = array<i64: 1>}, {transform_indices = @transform_1, window_bounds = array<i64: 1>}, {transform_indices = @transform_2, window_bounds = array<i64: 1>}, {transform_indices = @transform_3, window_bounds = array<i64: 1, 10, 128>}, {transform_indices = @transform_4, window_bounds = array<i64: 1, 10, 128>}, {transform_indices = @transform_5, window_bounds = array<i64: 1, 10, 10>}, {transform_indices = @transform_6, window_bounds = array<i64: 1, 10, 128>}]} {
    %c0 = arith.constant 0 : index
    %c0_0 = arith.constant 0 : index
    %c0_1 = arith.constant 0 : index
    %0 = vector.load %arg4[%c0, %c0_0, %c0_1] : memref<1x10x128xf32, #tpu.memory_space<vmem>>, vector<1x10x128xf32>
    %1 = arith.truncf %0 : vector<1x10x128xf32> to vector<1x10x128xbf16>
    %c0_2 = arith.constant 0 : index
    %c0_3 = arith.constant 0 : index
    %c0_4 = arith.constant 0 : index
    %2 = vector.load %arg5[%c0_2, %c0_3, %c0_4] : memref<1x10x128xf32, #tpu.memory_space<vmem>>, vector<1x10x128xf32>
    %3 = arith.truncf %2 : vector<1x10x128xf32> to vector<1x10x128xbf16>
    "tpu.trace_start"() <{level = 10 : i32, message = "bqd,bkd->bqk"}> : () -> ()
    %cst = arith.constant dense<0.000000e+00> : vector<1x10x10xf32>
    %4 = tpu.matmul %1, %3, %cst {dimension_numbers = #tpu.dot_dimension_numbers<[2], [2], [1], [1], [0, 0, 0, 1, 1, 1], [0], [0]>} : vector<1x10x128xbf16>, vector<1x10x128xbf16>, vector<1x10x10xf32> -> vector<1x10x10xf32>
    "tpu.trace_stop"() : () -> ()
    %c0_5 = arith.constant 0 : index
    %5 = memref.load %arg1[%c0_5] : memref<1xf32, #tpu.memory_space<smem>>
    %6 = vector.broadcast %5 : f32 to vector<1x10x10xf32>
    %7 = arith.mulf %4, %6 : vector<1x10x10xf32>
    %cst_6 = arith.constant dense<0xFF800000> : vector<1x10xf32>
    %8 = vector.multi_reduction <maximumf>, %7, %cst_6 [2] : vector<1x10x10xf32> to vector<1x10xf32>
    %9 = vector.shape_cast %8 : vector<1x10xf32> to vector<1x10x1xf32>
    %10 = vector.broadcast %9 : vector<1x10x1xf32> to vector<1x10x10xf32>
    %11 = arith.subf %7, %10 : vector<1x10x10xf32>
    %12 = math.exp %11 : vector<1x10x10xf32>
    %cst_7 = arith.constant dense<0.000000e+00> : vector<1x10xf32>
    %13 = vector.multi_reduction <add>, %12, %cst_7 [2] : vector<1x10x10xf32> to vector<1x10xf32>
    %14 = vector.shape_cast %13 : vector<1x10xf32> to vector<1x10x1xf32>
    %c0_8 = arith.constant 0 : index
    %c0_9 = arith.constant 0 : index
    %c0_10 = arith.constant 0 : index
    %15 = vector.load %arg6[%c0_8, %c0_9, %c0_10] : memref<1x10x10xf32, #tpu.memory_space<vmem>>, vector<1x10x10xf32>
    %c0_11 = arith.constant 0 : index
    %16 = memref.load %arg2[%c0_11] : memref<1xf32, #tpu.memory_space<smem>>
    %17 = vector.broadcast %16 : f32 to vector<1x10x10xf32>
    %18 = arith.cmpf oge, %15, %17 : vector<1x10x10xf32>
    %cst_12 = arith.constant 0.000000e+00 : f32
    %19 = vector.broadcast %cst_12 : f32 to vector<1x10x10xf32>
    %20 = arith.select %18, %12, %19 : vector<1x10x10xi1>, vector<1x10x10xf32>
    %21 = arith.truncf %20 : vector<1x10x10xf32> to vector<1x10x10xbf16>
    "tpu.trace_start"() <{level = 10 : i32, message = "bqk,bkd->bqd"}> : () -> ()
    %cst_13 = arith.constant dense<0.000000e+00> : vector<1x10x128xf32>
    %22 = tpu.matmul %21, %3, %cst_13 {dimension_numbers = #tpu.dot_dimension_numbers<[2], [1], [1], [2], [0, 0, 0, 1, 1, 2], [0], [0]>} : vector<1x10x10xbf16>, vector<1x10x128xbf16>, vector<1x10x128xf32> -> vector<1x10x128xf32>
    "tpu.trace_stop"() : () -> ()
    %c0_14 = arith.constant 0 : index
    %23 = memref.load %arg3[%c0_14] : memref<1xf32, #tpu.memory_space<smem>>
    %24 = vector.broadcast %23 : f32 to vector<1x10x1xf32>
    %25 = arith.divf %24, %14 : vector<1x10x1xf32>
    %26 = vector.broadcast %25 : vector<1x10x1xf32> to vector<1x10x128xf32>
    %27 = arith.mulf %22, %26 : vector<1x10x128xf32>
    %c0_15 = arith.constant 0 : index
    %c0_16 = arith.constant 0 : index
    %c0_17 = arith.constant 0 : index
    %28 = vector.load %arg7[%c0_15, %c0_16, %c0_17] : memref<1x10x128xf32, #tpu.memory_space<vmem>>, vector<1x10x128xf32>
    tpu.vector_store %arg7[%c0_15, %c0_16, %c0_17], %27 {strides = array<i32>} : memref<1x10x128xf32, #tpu.memory_space<vmem>>, vector<1x10x128xf32>,
    return
  }
  func.func @transform_0(%arg0: i32) -> i32 {
    %c0_i32 = arith.constant 0 : i32
    %c0_i32_0 = arith.constant 0 : i32
    return %c0_i32 : i32
  }
  func.func @transform_1(%arg0: i32) -> i32 {
    %c0_i32 = arith.constant 0 : i32
    %c0_i32_0 = arith.constant 0 : i32
    return %c0_i32 : i32
  }
  func.func @transform_2(%arg0: i32) -> i32 {
    %c0_i32 = arith.constant 0 : i32
    %c0_i32_0 = arith.constant 0 : i32
    return %c0_i32 : i32
  }
  func.func @transform_3(%arg0: i32) -> (i32, i32, i32) {
    %c0_i32 = arith.constant 0 : i32
    %c0_i32_0 = arith.constant 0 : i32
    %c0_i32_1 = arith.constant 0 : i32
    return %arg0, %c0_i32, %c0_i32_0 : i32, i32, i32
  }
  func.func @transform_4(%arg0: i32) -> (i32, i32, i32) {
    %c0_i32 = arith.constant 0 : i32
    %c0_i32_0 = arith.constant 0 : i32
    %c0_i32_1 = arith.constant 0 : i32
    return %arg0, %c0_i32, %c0_i32_0 : i32, i32, i32
  }
  func.func @transform_5(%arg0: i32) -> (i32, i32, i32) {
    %c0_i32 = arith.constant 0 : i32
    %c0_i32_0 = arith.constant 0 : i32
    %c0_i32_1 = arith.constant 0 : i32
    return %arg0, %c0_i32, %c0_i32_0 : i32, i32, i32
  }
  func.func @transform_6(%arg0: i32) -> (i32, i32, i32) {
    %c0_i32 = arith.constant 0 : i32
    %c0_i32_0 = arith.constant 0 : i32
    %c0_i32_1 = arith.constant 0 : i32
    return %arg0, %c0_i32, %c0_i32_0 : i32, i32, i32
  }
}

</mosaic_0001>

<llo_original>
// kernel: tpu_custom_call.1
$region0: #{tpu_custom_call.1}
  #allocation0 [shape = 'u32[]', space=smem, size = 0x4, offset = 0x4, fixed_abs, tag = 'smem constant byte address 0x4 - core index']
  #allocation1 [shape = 'u32[144,128]{1,0:T(1,128)}', space=vmem, size = 0x12000, scoped, tag = 'internal scratch']
  #allocation2 [shape = 'f32[1]{0:T(128)S(6)}', space=smem, size = 0x200, scoped, tag = 'scoped memory for tpu_custom_call.1']
  #allocation3 [shape = 'f32[1]{0:T(128)S(6)}', space=smem, size = 0x200, scoped, tag = 'scoped memory for tpu_custom_call.1']
  #allocation4 [shape = 'f32[1]{0:T(128)S(6)}', space=smem, size = 0x200, scoped, tag = 'scoped memory for tpu_custom_call.1']
  %s0 = inlined_call_operand.<no memory space> [shape: f32[1], index: 0, kind: input, shape index: {}]
  %s1 = inlined_call_operand.<no memory space> [shape: f32[1], index: 1, kind: input, shape index: {}]
  %s2 = inlined_call_operand.<no memory space> [shape: f32[1], index: 2, kind: input, shape index: {}]
  %s3 = inlined_call_operand.vmem [shape: f32[1,10,128], index: 3, kind: input, shape index: {}]
  %s4 = inlined_call_operand.vmem [shape: f32[1,10,128], index: 4, kind: input, shape index: {}]
  %s5 = inlined_call_operand.vmem [shape: f32[1,10,10], index: 5, kind: input, shape index: {}]
  %s6 = inlined_call_operand.vmem [shape: f32[1,10,128], index: 6, kind: output, shape index: {}]
  %s7 = sld [smem:[#allocation0]]
  $region34: #{tpu_custom_call.1} parent=0
    _
  %s9 = ssub.s32 1, %s7
  %s10 = scalar_select 0, %s9, %s7
  %11 = sst [smem:[#allocation2]] %s0
  %12 = sst [smem:[#allocation3]] %s1
  %13 = sst [smem:[#allocation4]] %s2
  // Predicated region
  $region2: #{tpu_custom_call.1} parent=0 // pred_check
    _
  $region3: #{tpu_custom_call.1} parent=0 // pred_check_branch
    %15 = sbr.rel (0) target = $region5
  $region4: #{tpu_custom_call.1} parent=0 // pred_region
    _
  $region5: #{tpu_custom_call.1} parent=0 // pred_fallthru
    _
  // Predicated region
  $region6: #{tpu_custom_call.1} parent=0 // pred_check
    _
  $region7: #{tpu_custom_call.1} parent=0 // pred_check_branch
    %17 = sbr.rel (0) target = $region9
  $region8: #{tpu_custom_call.1} parent=0 // pred_region
    _
  $region9: #{tpu_custom_call.1} parent=0 // pred_fallthru
    _
  // Predicated region
  $region10: #{tpu_custom_call.1} parent=0 // pred_check
    _
  $region11: #{tpu_custom_call.1} parent=0 // pred_check_branch
    %19 = sbr.rel (0) target = $region13
  $region12: #{tpu_custom_call.1} parent=0 // pred_region
    _
  $region13: #{tpu_custom_call.1} parent=0 // pred_fallthru
    _
  // Predicated region
  $region14: #{tpu_custom_call.1} parent=0 // pred_check
    _
  $region15: #{tpu_custom_call.1} parent=0 // pred_check_branch
    %21 = sbr.rel (0) target = $region17
  $region16: #{tpu_custom_call.1} parent=0 // pred_region
    _
  $region17: #{tpu_custom_call.1} parent=0 // pred_fallthru
    _
  // Predicated region
  $region18: #{tpu_custom_call.1} parent=0 // pred_check
    _
  $region19: #{tpu_custom_call.1} parent=0 // pred_check_branch
    %23 = sbr.rel (0) target = $region21
  $region20: #{tpu_custom_call.1} parent=0 // pred_region
    _
  $region21: #{tpu_custom_call.1} parent=0 // pred_fallthru
    _
  // Predicated region
  $region22: #{tpu_custom_call.1} parent=0 // pred_check
    _
  $region23: #{tpu_custom_call.1} parent=0 // pred_check_branch
    %25 = sbr.rel (0) target = $region25
  $region24: #{tpu_custom_call.1} parent=0 // pred_region
    _
  $region25: #{tpu_custom_call.1} parent=0 // pred_fallthru
    _
  %v27 = vld [vmem:[%s3] sm:$0xff]
  %v28 = vld [vmem:[%s3 + $0x8] sm:$0x3]
  %v29 = vpack.c.bf16 %v28, %v27
  %v30 = vld [vmem:[%s4] sm:$0xff]
  %v31 = vld [vmem:[%s4 + $0x8] sm:$0x3]
  %v32 = vpack.c.bf16 %v31, %v30
  %33 = vmatprep.subr.bf16.mxu0 0
  %34 = vmatpush1.bf16.xpose.msra.mxu0 0
  %35 = vmatprep.subr.bf16.mxu0 0
  %36 = vmatpush1.bf16.xpose.msra.mxu0 0
  %37 = vmatprep.subr.bf16.mxu0 0
  %38 = vmatpush1.bf16.xpose.msra.mxu0 0
  %39 = vmatprep.subr.bf16.mxu0 0
  %40 = vmatpush1.bf16.xpose.msra.mxu0 0
  %41 = vmatprep.subr.bf16.mxu0 0
  %42 = vmatpush1.bf16.xpose.msra.mxu0 0
  %43 = vmatprep.subr.bf16.mxu0 0
  %44 = vmatpush1.bf16.xpose.msra.mxu0 0
  %45 = vmatprep.subr.bf16.mxu0 0
  %46 = vmatpush1.bf16.xpose.msra.mxu0 0
  %47 = vmatprep.subr.bf16.mxu0 0
  %48 = vmatpush1.bf16.xpose.msra.mxu0 %v32
  %49 = vmatprep.subr.bf16.mxu0 0
  %50 = vmatpush2.bf16.xpose.msra.mxu0 0
  %51 = vmatprep.subr.bf16.mxu0 0
  %52 = vmatpush2.bf16.xpose.msra.mxu0 0
  %53 = vmatprep.subr.bf16.mxu0 0
  %54 = vmatpush2.bf16.xpose.msra.mxu0 0
  %55 = vmatprep.subr.bf16.mxu0 0
  %56 = vmatpush2.bf16.xpose.msra.mxu0 0
  %57 = vmatprep.subr.bf16.mxu0 0
  %58 = vmatpush2.bf16.xpose.msra.mxu0 0
  %59 = vmatprep.subr.bf16.mxu0 0
  %60 = vmatpush2.bf16.xpose.msra.mxu0 0
  %61 = vmatprep.subr.bf16.mxu0 0
  %62 = vmatpush2.bf16.xpose.msra.mxu0 0
  %63 = vmatprep.subr.bf16.mxu0 0
  %64 = vmatpush2.bf16.xpose.msra.mxu0 0
  %65 = vmatprep.mubr.bf16.mxu0 0
  %66 = vmatmul.mubr.bf16.gmra.mxu0 %v29
  %v67 = vpop.f32.mrf.mxu0
  %v68 = vadd.f32 0.0, %v67
  %v69 = vpop.f32.mrf.mxu0
  %v70 = vpop.f32.mrf.mxu0
  %v71 = vadd.f32 0.0, %v70
  %v72 = vpop.f32.mrf.mxu0
  %73 = vdwg.mxu0
  %s74 = sld [smem:[#allocation2]]
  %v75 = vstv %s74
  %v76 = vmul.f32 %v68, %v75
  %v77 = vmul.f32 %v71, %v75
  %vm78 = vcmask 80896
  %v79 = vsel %vm78, %v76, -inf
  %80 = vmax.xlane.f32.xlu0 %v79
  %v81 = vpop.xlane.xlu0 %80
  %vm82 = vcmask 74752
  %v83 = vsel %vm82, %v77, -inf
  %84 = vmax.xlane.f32.xlu0 %v83
  %v85 = vpop.xlane.xlu0 %84
  %v86 = vsub.f32 %v76, %v81
  %v87 = vsub.f32 %v77, %v85
  %v88 = vmul.f32 %v86, 1.442695
  %v89 = vpow.pop %v88
  %v90 = vmul.f32 %v87, 1.442695
  %v91 = vpow.pop %v90
  %v92 = vsel %vm78, %v89, 0.0
  %93 = vadd.xlane.f32.xlu0 %v92
  %v94 = vpop.xlane.xlu0 %93
  %v95 = vsel %vm82, %v91, 0.0
  %96 = vadd.xlane.f32.xlu0 %v95
  %v97 = vpop.xlane.xlu0 %96
  %v98 = vld [vmem:[%s5] sm:$0xff]
  %v99 = vld [vmem:[%s5 + $0x8] sm:$0x3]
  %s100 = sld [smem:[#allocation3]]
  %v101 = vstv %s100
  %vm102 = vcmp.ge.f32.partialorder %v98, %v101
  %vm103 = vcmp.ge.f32.partialorder %v99, %v101
  %v104 = vsel %vm102, %v89, 0.0
  %v105 = vsel %vm103, %v91, 0.0
  %v106 = vpack.c.bf16 %v105, %v104
  %v108 = vsel %vm78, %v106, 0
  %vm110 = vcmask 1044480
  %v112 = vsel %vm110, %v32, 0
  %114 = vmatprep.subr.bf16.mxu0 0
  %115 = vmatpush1.bf16.msra.mxu0 0
  %116 = vmatprep.subr.bf16.mxu0 0
  %117 = vmatpush1.bf16.msra.mxu0 0
  %118 = vmatprep.subr.bf16.mxu0 0
  %119 = vmatpush1.bf16.msra.mxu0 0
  %120 = vmatprep.subr.bf16.mxu0 0
  %121 = vmatpush1.bf16.msra.mxu0 0
  %122 = vmatprep.subr.bf16.mxu0 0
  %123 = vmatpush1.bf16.msra.mxu0 0
  %124 = vmatprep.subr.bf16.mxu0 0
  %125 = vmatpush1.bf16.msra.mxu0 0
  %126 = vmatprep.subr.bf16.mxu0 0
  %127 = vmatpush1.bf16.msra.mxu0 0
  %128 = vmatprep.subr.bf16.mxu0 0
  %129 = vmatpush1.bf16.msra.mxu0 %v112
  %130 = vmatprep.subr.bf16.mxu0 0
  %131 = vmatpush2.bf16.msra.mxu0 0
  %132 = vmatprep.subr.bf16.mxu0 0
  %133 = vmatpush2.bf16.msra.mxu0 0
  %134 = vmatprep.subr.bf16.mxu0 0
  %135 = vmatpush2.bf16.msra.mxu0 0
  %136 = vmatprep.subr.bf16.mxu0 0
  %137 = vmatpush2.bf16.msra.mxu0 0
  %138 = vmatprep.subr.bf16.mxu0 0
  %139 = vmatpush2.bf16.msra.mxu0 0
  %140 = vmatprep.subr.bf16.mxu0 0
  %141 = vmatpush2.bf16.msra.mxu0 0
  %142 = vmatprep.subr.bf16.mxu0 0
  %143 = vmatpush2.bf16.msra.mxu0 0
  %144 = vmatprep.subr.bf16.mxu0 0
  %145 = vmatpush2.bf16.msra.mxu0 0
  %146 = vmatprep.mubr.bf16.mxu0 0
  %147 = vmatmul.mubr.bf16.gmra.mxu0 %v108
  %v148 = vpop.f32.mrf.mxu0
  %v149 = vadd.f32 0.0, %v148
  %v150 = vpop.f32.mrf.mxu0
  %v151 = vpop.f32.mrf.mxu0
  %v152 = vadd.f32 0.0, %v151
  %v153 = vpop.f32.mrf.mxu0
  %154 = vdwg.mxu0
  %s155 = sld [smem:[#allocation4]]
  %v156 = vstv %s155
  %v157 = vrcp.pop %v94
  %v158 = vmul.f32 %v156, %v157
  %v159 = vrcp.pop %v97
  %v160 = vmul.f32 %v156, %v159
  %v161 = vmul.f32 %v149, %v158
  %v162 = vmul.f32 %v152, %v160
  %163 = vst [vmem:[%s6] sm:$0xff] %v161
  %164 = vst [vmem:[%s6 + $0x8] sm:$0x3] %v162
  // Predicated region
  $region26: #{tpu_custom_call.1} parent=0 // pred_check
    _
  $region27: #{tpu_custom_call.1} parent=0 // pred_check_branch
    %166 = sbr.rel (0) target = $region29
  $region28: #{tpu_custom_call.1} parent=0 // pred_region
    _
  $region29: #{tpu_custom_call.1} parent=0 // pred_fallthru
    _
  // Predicated region
  $region30: #{tpu_custom_call.1} parent=0 // pred_check
    _
  $region31: #{tpu_custom_call.1} parent=0 // pred_check_branch
    %168 = sbr.rel (0) target = $region33
  $region32: #{tpu_custom_call.1} parent=0 // pred_region
    _
  $region33: #{tpu_custom_call.1} parent=0 // pred_fallthru
    _

</llo_original>
